<compile_context>
chip_gen: v6e
topology: v6e:2x2x1
jax: 0.10.0
libtpu: 0.0.40
codegen_flags: <defaults>
</compile_context>

<pallas_src>
import functools

import numpy as np
import jax
import jax.numpy as jnp
from jax.experimental import pallas as pl
from jax.experimental.pallas import tpu as pltpu


def _pick_images_per_step(n, hw, target_lanes=1024, max_images=32):
    """Pick how many images to fold into one grid step."""
    divs = [d for d in range(1, n + 1) if n % d == 0 and d <= max_images]
    want = max(1, -(-target_lanes // hw))            # ceil(target_lanes / hw)
    geq = [d for d in divs if d >= want]
    nb = geq[0] if geq else divs[-1]
    # Keep >= 2 parallel grid steps when possible (v7x has 2 TensorCores).
    if n // nb < 2:
        two = [d for d in divs if n // d >= 2]
        if two:
            nb = two[-1]
    return nb


def _sbb_kernel(H, W, nb, mxu_dtype,
                x_ref, w1_ref, w2_ref, w3_ref, w4_ref, b_ref, m_ref, o_ref):
    """One chunk of `nb` images per grid step (lane-major, batch-folded).

    x_ref : (nb, Cin, HW)    input images (f32)
    w1    : (C4, Cin)        1x1 conv
    w2    : (3*C4, C4)       (3,1) conv, taps stacked along M: [h-1 ; h ; h+1]
    w3    : (3*C4, C4)       (1,3) conv, taps stacked along M: [w-1 ; w ; w+1]
    w4    : (Cout, C4)       1x1 conv
    b_ref : (3*C4+Cout, 1)   packed biases [b1; b2; b3; b4] (f32)
    m_ref : (4*C4, L)        0/1 border masks [up; down; left; right] (f32)
    o_ref : (nb, Cout, HW)   output (f32)
    """
    HW = H * W
    L = nb * HW
    c4 = w1_ref.shape[0]
    f32 = jnp.float32

    # Fold the batch chunk onto the lane axis: (Cin, nb*HW).
    if nb > 1:
        x = jnp.concatenate([x_ref[n] for n in range(nb)], axis=1)
    else:
        x = x_ref[0]

    # Packed biases / hoisted masks (resident inputs, just sliced here).
    b = b_ref[...]
    b1, b2, b3, b4 = b[0:c4], b[c4:2 * c4], b[2 * c4:3 * c4], b[3 * c4:]
    m = m_ref[...]
    m_up, m_down = m[0:c4], m[c4:2 * c4]
    m_left, m_right = m[2 * c4:3 * c4], m[3 * c4:4 * c4]

    # ---- 1x1 conv + ReLU ----------------------------------------------------
    h1 = jnp.dot(w1_ref[...], x.astype(mxu_dtype),
                 preferred_element_type=f32) + b1
    h1 = jnp.maximum(h1, 0.0)                                      # (C4, L)

    # ---- (3,1) conv along H (pad 1) + ReLU ------------------------------------
    # Taps stacked on the weight M axis; roll/mask the *result* slabs (the XLU
    # rolls commute with the channel contraction -> no (3*C4,L) concat, rolls
    # stay off the MXU critical path).
    y = jnp.dot(w2_ref[...], h1.astype(mxu_dtype), preferred_element_type=f32)
    h2 = (m_up * pltpu.roll(y[0:c4], W, axis=1)                    # in[h-1, w]
          + y[c4:2 * c4]                                           # in[h,   w]
          + m_down * pltpu.roll(y[2 * c4:3 * c4], L - W, axis=1)   # in[h+1, w]
          + b2)
    h2 = jnp.maximum(h2, 0.0)                                      # (C4, L)

    # ---- (1,3) conv along W (pad 1) + ReLU ------------------------------------
    z = jnp.dot(w3_ref[...], h2.astype(mxu_dtype), preferred_element_type=f32)
    h3 = (m_left * pltpu.roll(z[0:c4], 1, axis=1)                  # in[h, w-1]
          + z[c4:2 * c4]                                           # in[h, w  ]
          + m_right * pltpu.roll(z[2 * c4:3 * c4], L - 1, axis=1)  # in[h, w+1]
          + b3)
    h3 = jnp.maximum(h3, 0.0)                                      # (C4, L)

    # ---- final 1x1 conv --------------------------------------------------------
    out = jnp.dot(w4_ref[...], h3.astype(mxu_dtype),
                  preferred_element_type=f32) + b4                 # (Cout, L)

    # Un-fold lanes back to per-image dense (Cout, HW) stores (256-lane aligned
    # vreg slices -> unmasked stores, no XLA transpose needed outside).
    for n in range(nb):
        o_ref[n] = out[:, n * HW:(n + 1) * HW]


def small_basic_block_pallas(x_nchw, params, *, mxu_dtype=jnp.bfloat16,
                             images_per_step=None):
    """x_nchw: (N, Cin, H, W) float32.  Returns (N, Cout, H, W) float32."""
    w1, b1, w2, b2, w3, b3, w4, b4 = params        # PyTorch OIHW-shaped weights
    N, Cin, H, W = x_nchw.shape
    C4 = w1.shape[0]
    Cout = w4.shape[0]
    HW = H * W

    nb = images_per_step if images_per_step is not None else _pick_images_per_step(N, HW)
    assert N % nb == 0, (N, nb)
    L = nb * HW
    grid = (N // nb,)

    # NCHW -> (N, Cin, H*W): pure reshape (spatial already contiguous).
    x_flat = x_nchw.reshape(N, Cin, HW)

    # Re-pack conv weights for lane-major matmuls (out-channels on rows).
    # (3,1)/(1,3) taps stacked along the *output* (M) axis: row = kh*C4 + c_out.
    w1_t = w1[:, :, 0, 0].astype(mxu_dtype)                                  # (C4, Cin)
    w2_t = jnp.transpose(w2[:, :, :, 0], (2, 0, 1)).reshape(3 * C4, C4).astype(mxu_dtype)
    w3_t = jnp.transpose(w3[:, :, 0, :], (2, 0, 1)).reshape(3 * C4, C4).astype(mxu_dtype)
    w4_t = w4[:, :, 0, 0].astype(mxu_dtype)                                  # (Cout, C4)

    # Pack all biases into one operand (fewer tiny per-step DMAs).
    b_all = jnp.concatenate([b1, b2, b3, b4]).reshape(3 * C4 + Cout, 1).astype(jnp.float32)

    # Hoisted border masks (0/1 f32), image-safe across the folded batch.
    pos = np.arange(L, dtype=np.int64)
    masks_np = np.stack([
        (pos % HW) >= W,           # up    : in[h-1] valid
        (pos % HW) < HW - W,       # down  : in[h+1] valid
        (pos % W) != 0,            # left  : in[w-1] valid
        (pos % W) != W - 1,        # right : in[w+1] valid
    ]).astype(np.float32)                                                    # (4, L)
    masks = jnp.asarray(np.repeat(masks_np, C4, axis=0))                     # (4*C4, L)

    kernel = functools.partial(_sbb_kernel, H, W, nb, mxu_dtype)

    out_flat = pl.pallas_call(
        kernel,
        out_shape=jax.ShapeDtypeStruct((N, Cout, HW), jnp.float32),
        grid_spec=pltpu.PrefetchScalarGridSpec(
            num_scalar_prefetch=0,
            grid=grid,
            in_specs=[
                pl.BlockSpec((nb, Cin, HW), lambda i: (i, 0, 0)),
                pl.BlockSpec((C4, Cin), lambda i: (0, 0)),
                pl.BlockSpec((3 * C4, C4), lambda i: (0, 0)),
                pl.BlockSpec((3 * C4, C4), lambda i: (0, 0)),
                pl.BlockSpec((Cout, C4), lambda i: (0, 0)),
                pl.BlockSpec((3 * C4 + Cout, 1), lambda i: (0, 0)),
                pl.BlockSpec((4 * C4, L), lambda i: (0, 0)),
            ],
            out_specs=pl.BlockSpec((nb, Cout, HW), lambda i: (i, 0, 0)),
        ),
        compiler_params=pltpu.CompilerParams(
            dimension_semantics=("parallel",)),
    )(x_flat, w1_t, w2_t, w3_t, w4_t, b_all, masks)

    # (N, Cout, H*W) -> NCHW (pure reshape, no transpose needed).
    return out_flat.reshape(N, Cout, H, W)


def small_basic_block_ref(x_nchw, params):
    """Pure-JAX reference mirroring the PyTorch module (NCHW / OIHW)."""
    w1, b1, w2, b2, w3, b3, w4, b4 = params

    def conv(x, w, b, pad):
        y = jax.lax.conv_general_dilated(
            x, w, window_strides=(1, 1), padding=pad,
            dimension_numbers=("NCHW", "OIHW", "NCHW"))
        return y + b.reshape(1, -1, 1, 1)

    h = jax.nn.relu(conv(x_nchw, w1, b1, [(0, 0), (0, 0)]))
    h = jax.nn.relu(conv(h, w2, b2, [(1, 1), (0, 0)]))
    h = jax.nn.relu(conv(h, w3, b3, [(0, 0), (1, 1)]))
    return conv(h, w4, b4, [(0, 0), (0, 0)])


def make_params(key, ch_in, ch_out):
    """Deterministic synthetic parameters (PyTorch Conv2d OIHW shapes)."""
    c4 = ch_out // 4
    ks = jax.random.split(key, 8)
    s = 0.1
    w1 = s * jax.random.normal(ks[0], (c4, ch_in, 1, 1), jnp.float32)
    b1 = s * jax.random.normal(ks[1], (c4,), jnp.float32)
    w2 = s * jax.random.normal(ks[2], (c4, c4, 3, 1), jnp.float32)
    b2 = s * jax.random.normal(ks[3], (c4,), jnp.float32)
    w3 = s * jax.random.normal(ks[4], (c4, c4, 1, 3), jnp.float32)
    b3 = s * jax.random.normal(ks[5], (c4,), jnp.float32)
    w4 = s * jax.random.normal(ks[6], (ch_out, c4, 1, 1), jnp.float32)
    b4 = s * jax.random.normal(ks[7], (ch_out,), jnp.float32)
    return (w1, b1, w2, b2, w3, b3, w4, b4)


if __name__ == "__main__":
    key = jax.random.PRNGKey(0)
    kx, kp, kx2 = jax.random.split(key, 3)

    N, CH_IN, CH_OUT, H, W = 2, 4, 16, 16, 16  # placeholder; real shapes below
    N, CH_IN, CH_OUT, H, W = 2, 4, 32, 16, 16
    x = jax.random.normal(kx, (N, CH_IN, H, W), jnp.float32)
    params = make_params(kp, CH_IN, CH_OUT)
    ref = jax.block_until_ready(small_basic_block_ref(x, params))

    # 1) Exact f32-operand path at the spec shape (tight tolerance).
    out_f32 = jax.block_until_ready(
        small_basic_block_pallas(x, params, mxu_dtype=jnp.float32))
    assert out_f32.shape == (N, CH_OUT, H, W), out_f32.shape
    if not jnp.allclose(out_f32, ref, rtol=1e-4, atol=1e-4):
        raise AssertionError("Pallas kernel (f32) mismatch vs JAX reference")

    # 2) Default fast path: bf16 MXU operands, f32 accumulate (loose tolerance).
    out_bf16 = jax.block_until_ready(small_basic_block_pallas(x, params))
    if not jnp.allclose(out_bf16, ref, rtol=5e-2, atol=1e-2):
        raise AssertionError("Pallas kernel (bf16) mismatch vs JAX reference")

    # 3) Batch-folded path (N=8 -> 4 images/step, grid=(2,)), exact f32 check
    #    to verify the per-image border masks across the folded lane axis.
    N2 = 8
    x2 = jax.random.normal(kx2, (N2, CH_IN, H, W), jnp.float32)
    ref2 = jax.block_until_ready(small_basic_block_ref(x2, params))
    out2 = jax.block_until_ready(
        small_basic_block_pallas(x2, params, mxu_dtype=jnp.float32))
    assert out2.shape == (N2, CH_OUT, H, W), out2.shape
    if not jnp.allclose(out2, ref2, rtol=1e-4, atol=1e-4):
        raise AssertionError("Pallas kernel (folded batch) mismatch vs JAX reference")

    print("KERNEL_OK")
</pallas_src>

<mosaic_0001>
module attributes {stable_mosaic.version = 11 : i64} {
  func.func @_sbb_kernel(%arg0: i32, %arg1: memref<1x4x256xf32, #tpu.memory_space<vmem>>, %arg2: memref<8x4xf32, #tpu.memory_space<vmem>>, %arg3: memref<24x8xf32, #tpu.memory_space<vmem>>, %arg4: memref<24x8xf32, #tpu.memory_space<vmem>>, %arg5: memref<32x8xf32, #tpu.memory_space<vmem>>, %arg6: memref<56x1xf32, #tpu.memory_space<vmem>>, %arg7: memref<32x256xf32, #tpu.memory_space<vmem>>, %arg8: memref<1x32x256xf32, #tpu.memory_space<vmem>>) attributes {dimension_semantics = [#tpu.dimension_semantics<parallel>], iteration_bounds = array<i64: 2>, scalar_prefetch = 0 : i64, scratch_operands = 0 : i64, tpu.core_type = #tpu.core_type<tc>, window_params = [{transform_indices = @transform_0, window_bounds = array<i64: 1, 4, 256>}, {pipeline_mode = #tpu.pipeline_mode<synchronous>, transform_indices = @transform_1, window_bounds = array<i64: 8, 4>}, {pipeline_mode = #tpu.pipeline_mode<synchronous>, transform_indices = @transform_2, window_bounds = array<i64: 24, 8>}, {pipeline_mode = #tpu.pipeline_mode<synchronous>, transform_indices = @transform_3, window_bounds = array<i64: 24, 8>}, {pipeline_mode = #tpu.pipeline_mode<synchronous>, transform_indices = @transform_4, window_bounds = array<i64: 32, 8>}, {pipeline_mode = #tpu.pipeline_mode<synchronous>, transform_indices = @transform_5, window_bounds = array<i64: 56, 1>}, {pipeline_mode = #tpu.pipeline_mode<synchronous>, transform_indices = @transform_6, window_bounds = array<i64: 32, 256>}, {transform_indices = @transform_7, window_bounds = array<i64: 1, 32, 256>}]} {
    %c0 = arith.constant 0 : index
    %c0_0 = arith.constant 0 : index
    %c0_1 = arith.constant 0 : index
    %0 = vector.load %arg1[%c0, %c0_0, %c0_1] : memref<1x4x256xf32, #tpu.memory_space<vmem>>, vector<1x4x256xf32>
    %1 = vector.shape_cast %0 : vector<1x4x256xf32> to vector<4x256xf32>
    %c0_2 = arith.constant 0 : index
    %c0_3 = arith.constant 0 : index
    %2 = vector.load %arg6[%c0_2, %c0_3] : memref<56x1xf32, #tpu.memory_space<vmem>>, vector<56x1xf32>
    %3 = vector.extract_strided_slice %2 {offsets = [0, 0], sizes = [8, 1], strides = [1, 1]} : vector<56x1xf32> to vector<8x1xf32>
    %4 = vector.extract_strided_slice %2 {offsets = [8, 0], sizes = [8, 1], strides = [1, 1]} : vector<56x1xf32> to vector<8x1xf32>
    %5 = vector.extract_strided_slice %2 {offsets = [16, 0], sizes = [8, 1], strides = [1, 1]} : vector<56x1xf32> to vector<8x1xf32>
    %6 = vector.extract_strided_slice %2 {offsets = [24, 0], sizes = [32, 1], strides = [1, 1]} : vector<56x1xf32> to vector<32x1xf32>
    %c0_4 = arith.constant 0 : index
    %c0_5 = arith.constant 0 : index
    %7 = vector.load %arg7[%c0_4, %c0_5] : memref<32x256xf32, #tpu.memory_space<vmem>>, vector<32x256xf32>
    %8 = vector.extract_strided_slice %7 {offsets = [0, 0], sizes = [8, 256], strides = [1, 1]} : vector<32x256xf32> to vector<8x256xf32>
    %9 = vector.extract_strided_slice %7 {offsets = [8, 0], sizes = [8, 256], strides = [1, 1]} : vector<32x256xf32> to vector<8x256xf32>
    %10 = vector.extract_strided_slice %7 {offsets = [16, 0], sizes = [8, 256], strides = [1, 1]} : vector<32x256xf32> to vector<8x256xf32>
    %11 = vector.extract_strided_slice %7 {offsets = [24, 0], sizes = [8, 256], strides = [1, 1]} : vector<32x256xf32> to vector<8x256xf32>
    %c0_6 = arith.constant 0 : index
    %c0_7 = arith.constant 0 : index
    %12 = vector.load %arg2[%c0_6, %c0_7] : memref<8x4xf32, #tpu.memory_space<vmem>>, vector<8x4xf32>
    %cst = arith.constant dense<0.000000e+00> : vector<8x256xf32>
    %13 = tpu.matmul %12, %1, %cst {dimension_numbers = #tpu.dot_dimension_numbers<[1], [0], [0], [1], [0, 0, 1, 1], [], []>} : vector<8x4xf32>, vector<4x256xf32>, vector<8x256xf32> -> vector<8x256xf32>
    %14 = vector.broadcast %3 : vector<8x1xf32> to vector<8x256xf32>
    %15 = arith.addf %13, %14 : vector<8x256xf32>
    %cst_8 = arith.constant 0.000000e+00 : f32
    %16 = vector.broadcast %cst_8 : f32 to vector<8x256xf32>
    %17 = arith.maximumf %15, %16 : vector<8x256xf32>
    %c0_9 = arith.constant 0 : index
    %c0_10 = arith.constant 0 : index
    %18 = vector.load %arg3[%c0_9, %c0_10] : memref<24x8xf32, #tpu.memory_space<vmem>>, vector<24x8xf32>
    %cst_11 = arith.constant dense<0.000000e+00> : vector<24x256xf32>
    %19 = tpu.matmul %18, %17, %cst_11 {dimension_numbers = #tpu.dot_dimension_numbers<[1], [0], [0], [1], [0, 0, 1, 1], [], []>} : vector<24x8xf32>, vector<8x256xf32>, vector<24x256xf32> -> vector<24x256xf32>
    %20 = vector.extract_strided_slice %19 {offsets = [0, 0], sizes = [8, 256], strides = [1, 1]} : vector<24x256xf32> to vector<8x256xf32>
    %c16_i32 = arith.constant 16 : i32
    %21 = tpu.dynamic_rotate %20 by %c16_i32 dim 1 : vector<8x256xf32>, i32 -> vector<8x256xf32>
    %22 = arith.mulf %8, %21 : vector<8x256xf32>
    %23 = vector.extract_strided_slice %19 {offsets = [8, 0], sizes = [8, 256], strides = [1, 1]} : vector<24x256xf32> to vector<8x256xf32>
    %24 = arith.addf %22, %23 : vector<8x256xf32>
    %25 = vector.extract_strided_slice %19 {offsets = [16, 0], sizes = [8, 256], strides = [1, 1]} : vector<24x256xf32> to vector<8x256xf32>
    %c240_i32 = arith.constant 240 : i32
    %26 = tpu.dynamic_rotate %25 by %c240_i32 dim 1 : vector<8x256xf32>, i32 -> vector<8x256xf32>
    %27 = arith.mulf %9, %26 : vector<8x256xf32>
    %28 = arith.addf %24, %27 : vector<8x256xf32>
    %29 = vector.broadcast %4 : vector<8x1xf32> to vector<8x256xf32>
    %30 = arith.addf %28, %29 : vector<8x256xf32>
    %cst_12 = arith.constant 0.000000e+00 : f32
    %31 = vector.broadcast %cst_12 : f32 to vector<8x256xf32>
    %32 = arith.maximumf %30, %31 : vector<8x256xf32>
    %c0_13 = arith.constant 0 : index
    %c0_14 = arith.constant 0 : index
    %33 = vector.load %arg4[%c0_13, %c0_14] : memref<24x8xf32, #tpu.memory_space<vmem>>, vector<24x8xf32>
    %cst_15 = arith.constant dense<0.000000e+00> : vector<24x256xf32>
    %34 = tpu.matmul %33, %32, %cst_15 {dimension_numbers = #tpu.dot_dimension_numbers<[1], [0], [0], [1], [0, 0, 1, 1], [], []>} : vector<24x8xf32>, vector<8x256xf32>, vector<24x256xf32> -> vector<24x256xf32>
    %35 = vector.extract_strided_slice %34 {offsets = [0, 0], sizes = [8, 256], strides = [1, 1]} : vector<24x256xf32> to vector<8x256xf32>
    %c1_i32 = arith.constant 1 : i32
    %36 = tpu.dynamic_rotate %35 by %c1_i32 dim 1 : vector<8x256xf32>, i32 -> vector<8x256xf32>
    %37 = arith.mulf %10, %36 : vector<8x256xf32>
    %38 = vector.extract_strided_slice %34 {offsets = [8, 0], sizes = [8, 256], strides = [1, 1]} : vector<24x256xf32> to vector<8x256xf32>
    %39 = arith.addf %37, %38 : vector<8x256xf32>
    %40 = vector.extract_strided_slice %34 {offsets = [16, 0], sizes = [8, 256], strides = [1, 1]} : vector<24x256xf32> to vector<8x256xf32>
    %c255_i32 = arith.constant 255 : i32
    %41 = tpu.dynamic_rotate %40 by %c255_i32 dim 1 : vector<8x256xf32>, i32 -> vector<8x256xf32>
    %42 = arith.mulf %11, %41 : vector<8x256xf32>
    %43 = arith.addf %39, %42 : vector<8x256xf32>
    %44 = vector.broadcast %5 : vector<8x1xf32> to vector<8x256xf32>
    %45 = arith.addf %43, %44 : vector<8x256xf32>
    %cst_16 = arith.constant 0.000000e+00 : f32
    %46 = vector.broadcast %cst_16 : f32 to vector<8x256xf32>
    %47 = arith.maximumf %45, %46 : vector<8x256xf32>
    %c0_17 = arith.constant 0 : index
    %c0_18 = arith.constant 0 : index
    %48 = vector.load %arg5[%c0_17, %c0_18] : memref<32x8xf32, #tpu.memory_space<vmem>>, vector<32x8xf32>
    %cst_19 = arith.constant dense<0.000000e+00> : vector<32x256xf32>
    %49 = tpu.matmul %48, %47, %cst_19 {dimension_numbers = #tpu.dot_dimension_numbers<[1], [0], [0], [1], [0, 0, 1, 1], [], []>} : vector<32x8xf32>, vector<8x256xf32>, vector<32x256xf32> -> vector<32x256xf32>
    %50 = vector.broadcast %6 : vector<32x1xf32> to vector<32x256xf32>
    %51 = arith.addf %49, %50 : vector<32x256xf32>
    %c0_20 = arith.constant 0 : index
    %c0_21 = arith.constant 0 : index
    %c0_22 = arith.constant 0 : index
    %52 = vector.load %arg8[%c0_20, %c0_21, %c0_22] : memref<1x32x256xf32, #tpu.memory_space<vmem>>, vector<1x32x256xf32>
    %53 = vector.shape_cast %52 : vector<1x32x256xf32> to vector<32x256xf32>
    %54 = vector.shape_cast %51 : vector<32x256xf32> to vector<1x32x256xf32>
    tpu.vector_store %arg8[%c0_20, %c0_21, %c0_22], %54 {strides = array<i32>} : memref<1x32x256xf32, #tpu.memory_space<vmem>>, vector<1x32x256xf32>,
    return
  }
  func.func @transform_0(%arg0: i32) -> (i32, i32, i32) {
    %c0_i32 = arith.constant 0 : i32
    %c0_i32_0 = arith.constant 0 : i32
    %c0_i32_1 = arith.constant 0 : i32
    return %arg0, %c0_i32, %c0_i32_0 : i32, i32, i32
  }
  func.func @transform_1(%arg0: i32) -> (i32, i32) {
    %c0_i32 = arith.constant 0 : i32
    %c0_i32_0 = arith.constant 0 : i32
    %c0_i32_1 = arith.constant 0 : i32
    return %c0_i32, %c0_i32_0 : i32, i32
  }
  func.func @transform_2(%arg0: i32) -> (i32, i32) {
    %c0_i32 = arith.constant 0 : i32
    %c0_i32_0 = arith.constant 0 : i32
    %c0_i32_1 = arith.constant 0 : i32
    return %c0_i32, %c0_i32_0 : i32, i32
  }
  func.func @transform_3(%arg0: i32) -> (i32, i32) {
    %c0_i32 = arith.constant 0 : i32
    %c0_i32_0 = arith.constant 0 : i32
    %c0_i32_1 = arith.constant 0 : i32
    return %c0_i32, %c0_i32_0 : i32, i32
  }
  func.func @transform_4(%arg0: i32) -> (i32, i32) {
    %c0_i32 = arith.constant 0 : i32
    %c0_i32_0 = arith.constant 0 : i32
    %c0_i32_1 = arith.constant 0 : i32
    return %c0_i32, %c0_i32_0 : i32, i32
  }
  func.func @transform_5(%arg0: i32) -> (i32, i32) {
    %c0_i32 = arith.constant 0 : i32
    %c0_i32_0 = arith.constant 0 : i32
    %c0_i32_1 = arith.constant 0 : i32
    return %c0_i32, %c0_i32_0 : i32, i32
  }
  func.func @transform_6(%arg0: i32) -> (i32, i32) {
    %c0_i32 = arith.constant 0 : i32
    %c0_i32_0 = arith.constant 0 : i32
    %c0_i32_1 = arith.constant 0 : i32
    return %c0_i32, %c0_i32_0 : i32, i32
  }
  func.func @transform_7(%arg0: i32) -> (i32, i32, i32) {
    %c0_i32 = arith.constant 0 : i32
    %c0_i32_0 = arith.constant 0 : i32
    %c0_i32_1 = arith.constant 0 : i32
    return %arg0, %c0_i32, %c0_i32_0 : i32, i32, i32
  }
}

</mosaic_0001>

<llo_original>
// kernel: tpu_custom_call.1
$region0: #{tpu_custom_call.1}
  #allocation0 [shape = 'u32[]', space=smem, size = 0x4, offset = 0x4, fixed_abs, tag = 'smem constant byte address 0x4 - core index']
  #allocation1 [shape = 'u32[144,128]{1,0:T(1,128)}', space=vmem, size = 0x12000, scoped, tag = 'internal scratch']
  %s0 = inlined_call_operand.vmem [shape: f32[2,4,256], index: 0, kind: input, shape index: {}]
  %s1 = inlined_call_operand.vmem [shape: f32[8,4], index: 1, kind: input, shape index: {}]
  %s2 = inlined_call_operand.vmem [shape: f32[24,8], index: 2, kind: input, shape index: {}]
  %s3 = inlined_call_operand.vmem [shape: f32[24,8], index: 3, kind: input, shape index: {}]
  %s4 = inlined_call_operand.vmem [shape: f32[32,8], index: 4, kind: input, shape index: {}]
  %s5 = inlined_call_operand.vmem [shape: f32[56,1], index: 5, kind: input, shape index: {}]
  %s6 = inlined_call_operand.vmem [shape: f32[32,256], index: 6, kind: input, shape index: {}]
  %s7 = inlined_call_operand.hbm [shape: f32[2,32,256], index: 7, kind: output, shape index: {}]
  %s8 = sld [smem:[#allocation0]]
  $region61: #{tpu_custom_call.1} parent=0
    _
  %s10 = ssub.s32 1, %s8
  %s11 = scalar_select 0, %s10, %s8
  $region1: #{tpu_custom_call.1} parent=0
    #allocation2 [shape = 'u8[65536]{0}', space=vmem, size = 0x10000, scoped, tag = 'output window, operand 0']
    #allocation3 [shape = 's32[2]{0}', space=sflag, size = 0x8, scoped, tag = 'scoped memory for tpu_custom_call.1']
    %12 = vsyncpa [#allocation3], 0
    %s13 = scalar_lea.sflag [#allocation3], 1
    %14 = vsyncpa %s13, 0
    loop: start=0, step=1, limit=4
    $region2: #{tpu_custom_call.1} parent=1 // loop_pre_header
      _
    $region3: #{tpu_custom_call.1} parent=1 // loop_header
      %s16 = sphi 0, %s20
      %p17 = scmp.ge.s32.totalorder %s16, 4
      %s26 = sphi 0, %s28
      %s29 = sphi 0, %s26
      %s30 = sphi 0, %s29
      %s46 = sphi 0, %s30
      %s50 = sphi 0, %s50
      %s52 = sphi 0, %s50
      %s53 = sphi 0, %s52
      %s67 = sphi 0, %s53
      %s71 = sphi 0, %s71
      %s73 = sphi 0, %s71
      %s74 = sphi 0, %s73
      %s88 = sphi 0, %s74
      %s92 = sphi 0, %s92
      %s94 = sphi 0, %s92
      %s95 = sphi 0, %s94
      %s109 = sphi 0, %s95
      %s113 = sphi 0, %s113
      %s115 = sphi 0, %s113
      %s116 = sphi 0, %s115
      %s130 = sphi 0, %s116
      %s134 = sphi 0, %s134
      %s136 = sphi 0, %s134
      %s137 = sphi 0, %s136
      %s151 = sphi 0, %s137
      %s155 = sphi 0, %s155
      %s157 = sphi 0, %s155
      %s158 = sphi 0, %s157
      %s172 = sphi 0, %s158
      %s178 = sphi 0, %s180
      %s181 = sphi 0, %s178
      %s182 = sphi 0, %s181
      %s198 = sphi 0, %s182
    $region4: #{tpu_custom_call.1} parent=1 // loop_header_branch
      %19 = sbr.rel (%p17) target = $region8
    $region5: #{tpu_custom_call.1} parent=1 // loop_body
      %s21 = ssub.s32 %s16, 1
      %s22 = ssub.s32 %s16, 2
      %s23 = sadd.s32 %s16, 1
      %s24 = ssub.s32 %s16, %s23
      %p25 = scmp.eq.s32.totalorder %s24, 0
      %s27 = sadd.s32 %s26, 1
      %s28 = scalar_select %p25, %s26, %s27
      %p31 = pneg %p25
      %p32 = scmp.eq.s32.totalorder %s16, 1
      %p33 = por %p31, %p32
      %p34 = scmp.ne.s32.totalorder %s26, %s29
      %p35 = scmp.eq.s32.totalorder %s16, 0
      %p36 = por %p34, %p35
      %p37 = scmp.ne.s32.totalorder %s26, %s29
      %p38 = scmp.eq.s32.totalorder %s21, 1
      %p39 = por %p37, %p38
      %p40 = scmp.ne.s32.totalorder %s29, %s30
      %p41 = scmp.eq.s32.totalorder %s21, 0
      %p42 = por %p40, %p41
      %p43 = scmp.ne.s32.totalorder %s29, %s30
      %p44 = scmp.eq.s32.totalorder %s22, 1
      %p45 = por %p43, %p44
      %p47 = scmp.ne.s32.totalorder %s30, %s46
      %p48 = scmp.eq.s32.totalorder %s22, 0
      %p49 = por %p47, %p48
      %s51 = sadd.s32 %s50, 1
      %p54 = scmp.eq.s32.totalorder %s16, 1
      %p55 = scmp.ne.s32.totalorder %s50, %s52
      %p56 = scmp.eq.s32.totalorder %s16, 0
      %p57 = por %p55, %p56
      %p58 = scmp.ne.s32.totalorder %s50, %s52
      %p59 = scmp.eq.s32.totalorder %s21, 1
      %p60 = por %p58, %p59
      %p61 = scmp.ne.s32.totalorder %s52, %s53
      %p62 = scmp.eq.s32.totalorder %s21, 0
      %p63 = por %p61, %p62
      %p64 = scmp.ne.s32.totalorder %s52, %s53
      %p65 = scmp.eq.s32.totalorder %s22, 1
      %p66 = por %p64, %p65
      %p68 = scmp.ne.s32.totalorder %s53, %s67
      %p69 = scmp.eq.s32.totalorder %s22, 0
      %p70 = por %p68, %p69
      %s72 = sadd.s32 %s71, 1
      %p75 = scmp.eq.s32.totalorder %s16, 1
      %p76 = scmp.ne.s32.totalorder %s71, %s73
      %p77 = scmp.eq.s32.totalorder %s16, 0
      %p78 = por %p76, %p77
      %p79 = scmp.ne.s32.totalorder %s71, %s73
      %p80 = scmp.eq.s32.totalorder %s21, 1
      %p81 = por %p79, %p80
      %p82 = scmp.ne.s32.totalorder %s73, %s74
      %p83 = scmp.eq.s32.totalorder %s21, 0
      %p84 = por %p82, %p83
      %p85 = scmp.ne.s32.totalorder %s73, %s74
      %p86 = scmp.eq.s32.totalorder %s22, 1
      %p87 = por %p85, %p86
      %p89 = scmp.ne.s32.totalorder %s74, %s88
      %p90 = scmp.eq.s32.totalorder %s22, 0
      %p91 = por %p89, %p90
      %s93 = sadd.s32 %s92, 1
      %p96 = scmp.eq.s32.totalorder %s16, 1
      %p97 = scmp.ne.s32.totalorder %s92, %s94
      %p98 = scmp.eq.s32.totalorder %s16, 0
      %p99 = por %p97, %p98
      %p100 = scmp.ne.s32.totalorder %s92, %s94
      %p101 = scmp.eq.s32.totalorder %s21, 1
      %p102 = por %p100, %p101
      %p103 = scmp.ne.s32.totalorder %s94, %s95
      %p104 = scmp.eq.s32.totalorder %s21, 0
      %p105 = por %p103, %p104
      %p106 = scmp.ne.s32.totalorder %s94, %s95
      %p107 = scmp.eq.s32.totalorder %s22, 1
      %p108 = por %p106, %p107
      %p110 = scmp.ne.s32.totalorder %s95, %s109
      %p111 = scmp.eq.s32.totalorder %s22, 0
      %p112 = por %p110, %p111
      %s114 = sadd.s32 %s113, 1
      %p117 = scmp.eq.s32.totalorder %s16, 1
      %p118 = scmp.ne.s32.totalorder %s113, %s115
      %p119 = scmp.eq.s32.totalorder %s16, 0
      %p120 = por %p118, %p119
      %p121 = scmp.ne.s32.totalorder %s113, %s115
      %p122 = scmp.eq.s32.totalorder %s21, 1
      %p123 = por %p121, %p122
      %p124 = scmp.ne.s32.totalorder %s115, %s116
      %p125 = scmp.eq.s32.totalorder %s21, 0
      %p126 = por %p124, %p125
      %p127 = scmp.ne.s32.totalorder %s115, %s116
      %p128 = scmp.eq.s32.totalorder %s22, 1
      %p129 = por %p127, %p128
      %p131 = scmp.ne.s32.totalorder %s116, %s130
      %p132 = scmp.eq.s32.totalorder %s22, 0
      %p133 = por %p131, %p132
      %s135 = sadd.s32 %s134, 1
      %p138 = scmp.eq.s32.totalorder %s16, 1
      %p139 = scmp.ne.s32.totalorder %s134, %s136
      %p140 = scmp.eq.s32.totalorder %s16, 0
      %p141 = por %p139, %p140
      %p142 = scmp.ne.s32.totalorder %s134, %s136
      %p143 = scmp.eq.s32.totalorder %s21, 1
      %p144 = por %p142, %p143
      %p145 = scmp.ne.s32.totalorder %s136, %s137
      %p146 = scmp.eq.s32.totalorder %s21, 0
      %p147 = por %p145, %p146
      %p148 = scmp.ne.s32.totalorder %s136, %s137
      %p149 = scmp.eq.s32.totalorder %s22, 1
      %p150 = por %p148, %p149
      %p152 = scmp.ne.s32.totalorder %s137, %s151
      %p153 = scmp.eq.s32.totalorder %s22, 0
      %p154 = por %p152, %p153
      %s156 = sadd.s32 %s155, 1
      %p159 = scmp.eq.s32.totalorder %s16, 1
      %p160 = scmp.ne.s32.totalorder %s155, %s157
      %p161 = scmp.eq.s32.totalorder %s16, 0
      %p162 = por %p160, %p161
      %p163 = scmp.ne.s32.totalorder %s155, %s157
      %p164 = scmp.eq.s32.totalorder %s21, 1
      %p165 = por %p163, %p164
      %p166 = scmp.ne.s32.totalorder %s157, %s158
      %p167 = scmp.eq.s32.totalorder %s21, 0
      %p168 = por %p166, %p167
      %p169 = scmp.ne.s32.totalorder %s157, %s158
      %p170 = scmp.eq.s32.totalorder %s22, 1
      %p171 = por %p169, %p170
      %p173 = scmp.ne.s32.totalorder %s158, %s172
      %p174 = scmp.eq.s32.totalorder %s22, 0
      %p175 = por %p173, %p174
      %s176 = ssub.s32 %s16, %s23
      %p177 = scmp.eq.s32.totalorder %s176, 0
      %s179 = sadd.s32 %s178, 1
      %s180 = scalar_select %p177, %s178, %s179
      %p183 = pneg %p177
      %p184 = scmp.eq.s32.totalorder %s16, 1
      %p185 = por %p183, %p184
      %p186 = scmp.ne.s32.totalorder %s178, %s181
      %p187 = scmp.eq.s32.totalorder %s16, 0
      %p188 = por %p186, %p187
      %p189 = scmp.ne.s32.totalorder %s178, %s181
      %p190 = scmp.eq.s32.totalorder %s21, 1
      %p191 = por %p189, %p190
      %p192 = scmp.ne.s32.totalorder %s181, %s182
      %p193 = scmp.eq.s32.totalorder %s21, 0
      %p194 = por %p192, %p193
      %p195 = scmp.ne.s32.totalorder %s181, %s182
      %p196 = scmp.eq.s32.totalorder %s22, 1
      %p197 = por %p195, %p196
      %p199 = scmp.ne.s32.totalorder %s182, %s198
      %p200 = scmp.eq.s32.totalorder %s22, 0
      %p201 = por %p199, %p200
      %p202 = scmp.le.s32.totalorder 1, %s16
      %p203 = scmp.lt.s32.totalorder %s16, 3
      %p204 = pnand %p202, %p203
      %p205 = pneg %p204
      // Predicated region
      $region9: #{tpu_custom_call.1} parent=5 // pred_check
        _
      $region10: #{tpu_custom_call.1} parent=5 // pred_check_branch
        %207 = sbr.rel (%p204) target = $region12
      $region11: #{tpu_custom_call.1} parent=5 // pred_region
        %s208 = ssub.s32 %s16, 1
        // Predicated region
        $region13: #{tpu_custom_call.1} parent=11 // pred_check
          %p209 = pneg %p63
        $region14: #{tpu_custom_call.1} parent=11 // pred_check_branch
          %211 = sbr.rel (%p209) target = $region16
        $region15: #{tpu_custom_call.1} parent=11 // pred_region
          _
        $region16: #{tpu_custom_call.1} parent=11 // pred_fallthru
          _
        // Predicated region
        $region17: #{tpu_custom_call.1} parent=11 // pred_check
          %p212 = pneg %p84
        $region18: #{tpu_custom_call.1} parent=11 // pred_check_branch
          %214 = sbr.rel (%p212) target = $region20
        $region19: #{tpu_custom_call.1} parent=11 // pred_region
          _
        $region20: #{tpu_custom_call.1} parent=11 // pred_fallthru
          _
        // Predicated region
        $region21: #{tpu_custom_call.1} parent=11 // pred_check
          %p215 = pneg %p105
        $region22: #{tpu_custom_call.1} parent=11 // pred_check_branch
          %217 = sbr.rel (%p215) target = $region24
        $region23: #{tpu_custom_call.1} parent=11 // pred_region
          _
        $region24: #{tpu_custom_call.1} parent=11 // pred_fallthru
          _
        // Predicated region
        $region25: #{tpu_custom_call.1} parent=11 // pred_check
          %p218 = pneg %p126
        $region26: #{tpu_custom_call.1} parent=11 // pred_check_branch
          %220 = sbr.rel (%p218) target = $region28
        $region27: #{tpu_custom_call.1} parent=11 // pred_region
          _
        $region28: #{tpu_custom_call.1} parent=11 // pred_fallthru
          _
        // Predicated region
        $region29: #{tpu_custom_call.1} parent=11 // pred_check
          %p221 = pneg %p147
        $region30: #{tpu_custom_call.1} parent=11 // pred_check_branch
          %223 = sbr.rel (%p221) target = $region32
        $region31: #{tpu_custom_call.1} parent=11 // pred_region
          _
        $region32: #{tpu_custom_call.1} parent=11 // pred_fallthru
          _
        // Predicated region
        $region33: #{tpu_custom_call.1} parent=11 // pred_check
          %p224 = pneg %p168
        $region34: #{tpu_custom_call.1} parent=11 // pred_check_branch
          %226 = sbr.rel (%p224) target = $region36
        $region35: #{tpu_custom_call.1} parent=11 // pred_region
          _
        $region36: #{tpu_custom_call.1} parent=11 // pred_fallthru
          _
      $region12: #{tpu_custom_call.1} parent=5 // pred_fallthru
        _
      %p227 = scmp.lt.s32.totalorder %s16, 2
      // Predicated region
      $region37: #{tpu_custom_call.1} parent=5 // pred_check
        %p228 = pneg %p227
      $region38: #{tpu_custom_call.1} parent=5 // pred_check_branch
        %230 = sbr.rel (%p228) target = $region40
      $region39: #{tpu_custom_call.1} parent=5 // pred_region
        // Predicated region
        $region41: #{tpu_custom_call.1} parent=39 // pred_check
          %p231 = pneg %p36
        $region42: #{tpu_custom_call.1} parent=39 // pred_check_branch
          %233 = sbr.rel (%p231) target = $region44
        $region43: #{tpu_custom_call.1} parent=39 // pred_region
          %p234 = scmp.lt.s32.totalorder %s16, 1
          %s235 = scalar_select %p234, %s16, 1
          %s236 = smul.addr %s235, 2
          %s237 = smul.addr %s236, 4
          %s238 = scalar_lea.vmem %s0, %s237
        $region44: #{tpu_custom_call.1} parent=39 // pred_fallthru
          _
      $region40: #{tpu_custom_call.1} parent=5 // pred_fallthru
        _
      %p239 = scmp.le.s32.totalorder 1, %s16
      %p240 = scmp.lt.s32.totalorder %s16, 3
      %p241 = pnand %p239, %p240
      %p242 = pneg %p241
      // Predicated region
      $region45: #{tpu_custom_call.1} parent=5 // pred_check
        _
      $region46: #{tpu_custom_call.1} parent=5 // pred_check_branch
        %244 = sbr.rel (%p241) target = $region48
      $region47: #{tpu_custom_call.1} parent=5 // pred_region
        %s245 = ssub.s32 %s16, 1
        %p246 = scmp.lt.s32.totalorder %s21, 1
        %s247 = scalar_select %p246, %s21, 1
        %s248 = smul.addr %s247, 2
        %s249 = smul.addr %s248, 4
        %s250 = scalar_lea.vmem %s0, %s249
        %p251 = pneg %p42
        %p252 = pneg %p39
        %p253 = pneg %p63
        %p254 = pneg %p60
        %p255 = pneg %p84
        %p256 = pneg %p81
        %p257 = pneg %p105
        %p258 = pneg %p102
        %p259 = pneg %p126
        %p260 = pneg %p123
        %p261 = pneg %p147
        %p262 = pneg %p144
        %p263 = pneg %p168
        %p264 = pneg %p165
        %p265 = pneg %p194
        %p266 = pneg %p191
        %s267 = sand.u32 %s181, 1
        %s268 = scalar_lea.sflag [#allocation3], %s267
        %s269 = sand.u32 %s181, 1
        %s270 = smul.addr %s269, 64
        %s271 = scalar_lea.vmem [#allocation2], %s270
        %p272 = scmp.lt.s32.totalorder %s21, 1
        %s273 = scalar_select %p272, %s21, 1
        %s274 = smul.addr %s273, 2
        %s275 = smul.addr %s274, 4
        %s276 = scalar_lea.vmem %s0, %s275
        %v277 = vld [vmem:[%s276] sm:$0xff]
        %v278 = vld [vmem:[%s5] sm:$0xff]
        %v279 = vld [vmem:[%s5 + $0x8] sm:$0xff]
        %v280 = vld [vmem:[%s5 + $0x10] sm:$0xff]
        %v281 = vld [vmem:[%s5 + $0x18] sm:$0xff]
        %v282 = vld [vmem:[%s5 + $0x20] sm:$0xff]
        %v283 = vld [vmem:[%s5 + $0x28] sm:$0xff]
        %v284 = vld [vmem:[%s5 + $0x30] sm:$0xff]
        %v285 = vld [vmem:[%s6] sm:$0xff]
        %v286 = vld [vmem:[%s6 + $0x8] sm:$0xff]
        %v287 = vld [vmem:[%s6 + $0x10] sm:$0xff]
        %v288 = vld [vmem:[%s6 + $0x18] sm:$0xff]
        %v289 = vld [vmem:[%s6 + $0x20] sm:$0xff]
        %v290 = vld [vmem:[%s6 + $0x28] sm:$0xff]
        %v291 = vld [vmem:[%s6 + $0x30] sm:$0xff]
        %v292 = vld [vmem:[%s6 + $0x38] sm:$0xff]
        %v293 = vld [vmem:[%s1] sm:$0xff]
        %295 = vset.pattern.permute.xlu0 0
        %296 = vperm.xlu0 %295, %v278
        %v297 = vpop.permute.xlu0 %296
        %v300 = vcombine.high %v277, %v277
        %vm301 = vcmask 31744
        %v303 = vsel %vm301, %v293, 0
        %vm305 = vcmask 1043456
        %v306 = vsel %vm305, %v277, 0
        %v308 = vsel %vm305, %v300, 0
        %310 = vmatprep.subr.mxu0 0.0
        %311 = vmatpush1.msra.mxu0 0.0
        %312 = vmatprep.subr.mxu0 0.0
        %313 = vmatpush1.msra.mxu0 0.0
        %314 = vmatprep.subr.mxu0 0.0
        %315 = vmatpush1.msra.mxu0 0.0
        %316 = vmatprep.subr.mxu0 0.0
        %317 = vmatpush1.msra.mxu0 0.0
        %318 = vmatprep.subr.mxu0 0.0
        %319 = vmatpush1.msra.mxu0 0.0
        %320 = vmatprep.subr.mxu0 0.0
        %321 = vmatpush1.msra.mxu0 0.0
        %322 = vmatprep.subr.mxu0 0.0
        %323 = vmatpush1.msra.mxu0 0.0
        %324 = vmatprep.subr.mxu0 0.0
        %325 = vmatpush1.msra.mxu0 0.0
        %326 = vmatprep.subr.mxu0 0.0
        %327 = vmatpush1.msra.mxu0 0.0
        %328 = vmatprep.subr.mxu0 0.0
        %329 = vmatpush1.msra.mxu0 0.0
        %330 = vmatprep.subr.mxu0 0.0
        %331 = vmatpush1.msra.mxu0 0.0
        %332 = vmatprep.subr.mxu0 0.0
        %333 = vmatpush1.msra.mxu0 0.0
        %334 = vmatprep.subr.mxu0 0.0
        %335 = vmatpush1.msra.mxu0 0.0
        %336 = vmatprep.subr.mxu0 0.0
        %337 = vmatpush1.msra.mxu0 0.0
        %338 = vmatprep.subr.mxu0 0.0
        %339 = vmatpush1.msra.mxu0 0.0
        %340 = vmatprep.subr.mxu0 %v308
        %341 = vmatpush1.msra.mxu0 %v306
        %342 = vmatprep.subr.mxu0 0.0
        %343 = vmatpush2.msra.mxu0 0.0
        %344 = vmatprep.subr.mxu0 0.0
        %345 = vmatpush2.msra.mxu0 0.0
        %346 = vmatprep.subr.mxu0 0.0
        %347 = vmatpush2.msra.mxu0 0.0
        %348 = vmatprep.subr.mxu0 0.0
        %349 = vmatpush2.msra.mxu0 0.0
        %350 = vmatprep.subr.mxu0 0.0
        %351 = vmatpush2.msra.mxu0 0.0
        %352 = vmatprep.subr.mxu0 0.0
        %353 = vmatpush2.msra.mxu0 0.0
        %354 = vmatprep.subr.mxu0 0.0
        %355 = vmatpush2.msra.mxu0 0.0
        %356 = vmatprep.subr.mxu0 0.0
        %357 = vmatpush2.msra.mxu0 0.0
        %358 = vmatprep.subr.mxu0 0.0
        %359 = vmatpush2.msra.mxu0 0.0
        %360 = vmatprep.subr.mxu0 0.0
        %361 = vmatpush2.msra.mxu0 0.0
        %362 = vmatprep.subr.mxu0 0.0
        %363 = vmatpush2.msra.mxu0 0.0
        %364 = vmatprep.subr.mxu0 0.0
        %365 = vmatpush2.msra.mxu0 0.0
        %366 = vmatprep.subr.mxu0 0.0
        %367 = vmatpush2.msra.mxu0 0.0
        %368 = vmatprep.subr.mxu0 0.0
        %369 = vmatpush2.msra.mxu0 0.0
        %370 = vmatprep.subr.mxu0 0.0
        %371 = vmatpush2.msra.mxu0 0.0
        %372 = vmatprep.subr.mxu0 0.0
        %373 = vmatpush2.msra.mxu0 0.0
        %374 = vmatprep.mubr.f32.mxu0 0.0
        %375 = vmatmul.mubr.f32.gmra.mxu0 %v303
        %v376 = vpop.f32.mrf.mxu0
        %v377 = vadd.f32 %v297, %v376
        %v378 = vpop.f32.mrf.mxu0
        %v379 = vadd.f32 %v297, %v378
        %380 = vdwg.mxu0
        %v381 = vmax.f32 %v377, 0.0
        %v382 = vmax.f32 %v379, 0.0
        %v383 = vld [vmem:[%s2] sm:$0xff]
        %v384 = vld [vmem:[%s2 + $0x8] sm:$0xff]
        %v385 = vld [vmem:[%s2 + $0x10] sm:$0xff]
        %vm386 = vcmask 64512
        %v388 = vsel %vm386, %v383, 0
        %v391 = vsel %vm386, %v384, 0
        %v394 = vsel %vm386, %v385, 0
        %396 = vmatprep.subr.mxu0 0.0
        %397 = vmatpush1.msra.mxu0 0.0
        %398 = vmatprep.subr.mxu0 0.0
        %399 = vmatpush1.msra.mxu0 0.0
        %400 = vmatprep.subr.mxu0 0.0
        %401 = vmatpush1.msra.mxu0 0.0
        %402 = vmatprep.subr.mxu0 0.0
        %403 = vmatpush1.msra.mxu0 0.0
        %404 = vmatprep.subr.mxu0 0.0
        %405 = vmatpush1.msra.mxu0 0.0
        %406 = vmatprep.subr.mxu0 0.0
        %407 = vmatpush1.msra.mxu0 0.0
        %408 = vmatprep.subr.mxu0 0.0
        %409 = vmatpush1.msra.mxu0 0.0
        %410 = vmatprep.subr.mxu0 0.0
        %411 = vmatpush1.msra.mxu0 0.0
        %412 = vmatprep.subr.mxu0 0.0
        %413 = vmatpush1.msra.mxu0 0.0
        %414 = vmatprep.subr.mxu0 0.0
        %415 = vmatpush1.msra.mxu0 0.0
        %416 = vmatprep.subr.mxu0 0.0
        %417 = vmatpush1.msra.mxu0 0.0
        %418 = vmatprep.subr.mxu0 0.0
        %419 = vmatpush1.msra.mxu0 0.0
        %420 = vmatprep.subr.mxu0 0.0
        %421 = vmatpush1.msra.mxu0 0.0
        %422 = vmatprep.subr.mxu0 0.0
        %423 = vmatpush1.msra.mxu0 0.0
        %424 = vmatprep.subr.mxu0 0.0
        %425 = vmatpush1.msra.mxu0 0.0
        %426 = vmatprep.subr.mxu0 %v382
        %427 = vmatpush1.msra.mxu0 %v381
        %428 = vmatprep.subr.mxu0 0.0
        %429 = vmatpush2.msra.mxu0 0.0
        %430 = vmatprep.subr.mxu0 0.0
        %431 = vmatpush2.msra.mxu0 0.0
        %432 = vmatprep.subr.mxu0 0.0
        %433 = vmatpush2.msra.mxu0 0.0
        %434 = vmatprep.subr.mxu0 0.0
        %435 = vmatpush2.msra.mxu0 0.0
        %436 = vmatprep.subr.mxu0 0.0
        %437 = vmatpush2.msra.mxu0 0.0
        %438 = vmatprep.subr.mxu0 0.0
        %439 = vmatpush2.msra.mxu0 0.0
        %440 = vmatprep.subr.mxu0 0.0
        %441 = vmatpush2.msra.mxu0 0.0
        %442 = vmatprep.subr.mxu0 0.0
        %443 = vmatpush2.msra.mxu0 0.0
        %444 = vmatprep.subr.mxu0 0.0
        %445 = vmatpush2.msra.mxu0 0.0
        %446 = vmatprep.subr.mxu0 0.0
        %447 = vmatpush2.msra.mxu0 0.0
        %448 = vmatprep.subr.mxu0 0.0
        %449 = vmatpush2.msra.mxu0 0.0
        %450 = vmatprep.subr.mxu0 0.0
        %451 = vmatpush2.msra.mxu0 0.0
        %452 = vmatprep.subr.mxu0 0.0
        %453 = vmatpush2.msra.mxu0 0.0
        %454 = vmatprep.subr.mxu0 0.0
        %455 = vmatpush2.msra.mxu0 0.0
        %456 = vmatprep.subr.mxu0 0.0
        %457 = vmatpush2.msra.mxu0 0.0
        %458 = vmatprep.subr.mxu0 0.0
        %459 = vmatpush2.msra.mxu0 0.0
        %460 = vmatprep.mubr.f32.mxu0 0.0
        %461 = vmatmul.mubr.f32.gmra.mxu0 %v388
        %v462 = vpop.f32.mrf.mxu0
        %v463 = vadd.f32 0.0, %v462
        %v464 = vpop.f32.mrf.mxu0
        %v465 = vadd.f32 0.0, %v464
        %466 = vmatprep.mubr.f32.mxu0 0.0
        %467 = vmatmul.mubr.f32.gmra.mxu0 %v391
        %v468 = vpop.f32.mrf.mxu0
        %v469 = vadd.f32 0.0, %v468
        %v470 = vpop.f32.mrf.mxu0
        %v471 = vadd.f32 0.0, %v470
        %472 = vmatprep.mubr.f32.mxu0 0.0
        %473 = vmatmul.mubr.f32.gmra.mxu0 %v394
        %v474 = vpop.f32.mrf.mxu0
        %v475 = vadd.f32 0.0, %v474
        %v476 = vpop.f32.mrf.mxu0
        %v477 = vadd.f32 0.0, %v476
        %478 = vdwg.mxu0
        %479 = vrot.lane.b32.xlu0 %v463, 16
        %v480 = vpop.permute.xlu0 %479
        %481 = vrot.lane.b32.xlu0 %v465, 16
        %v482 = vpop.permute.xlu0 %481
        %v483 = vlaneseq
        %v484 = vand.u32 %v483, 127
        %vm485 = vcmp.lt.s32.totalorder %v484, 16
        %v486 = vsel %vm485, %v480, %v482
        %v487 = vsel %vm485, %v482, %v480
        %v488 = vmul.f32 %v285, %v487
        %v489 = vmul.f32 %v286, %v486
        %v490 = vadd.f32 %v488, %v469
        %v491 = vadd.f32 %v489, %v471
        %492 = vrot.lane.b32.xlu0 %v475, 112
        %v493 = vpop.permute.xlu0 %492
        %494 = vrot.lane.b32.xlu0 %v477, 112
        %v495 = vpop.permute.xlu0 %494
        %vm496 = vcmp.lt.s32.totalorder %v484, 112
        %v497 = vsel %vm496, %v493, %v495
        %v498 = vsel %vm496, %v495, %v493
        %v499 = vmul.f32 %v287, %v497
        %v500 = vmul.f32 %v288, %v498
        %v501 = vadd.f32 %v490, %v499
        %v502 = vadd.f32 %v491, %v500
        %504 = vset.pattern.permute.xlu0 0
        %505 = vperm.xlu0 %504, %v279
        %v506 = vpop.permute.xlu0 %505
        %v508 = vadd.f32 %v501, %v506
        %v509 = vadd.f32 %v502, %v506
        %v510 = vmax.f32 %v508, 0.0
        %v511 = vmax.f32 %v509, 0.0
        %v512 = vld [vmem:[%s3] sm:$0xff]
        %v513 = vld [vmem:[%s3 + $0x8] sm:$0xff]
        %v514 = vld [vmem:[%s3 + $0x10] sm:$0xff]
        %v516 = vsel %vm386, %v512, 0
        %v519 = vsel %vm386, %v513, 0
        %v522 = vsel %vm386, %v514, 0
        %524 = vmatprep.subr.mxu0 0.0
        %525 = vmatpush1.msra.mxu0 0.0
        %526 = vmatprep.subr.mxu0 0.0
        %527 = vmatpush1.msra.mxu0 0.0
        %528 = vmatprep.subr.mxu0 0.0
        %529 = vmatpush1.msra.mxu0 0.0
        %530 = vmatprep.subr.mxu0 0.0
        %531 = vmatpush1.msra.mxu0 0.0
        %532 = vmatprep.subr.mxu0 0.0
        %533 = vmatpush1.msra.mxu0 0.0
        %534 = vmatprep.subr.mxu0 0.0
        %535 = vmatpush1.msra.mxu0 0.0
        %536 = vmatprep.subr.mxu0 0.0
        %537 = vmatpush1.msra.mxu0 0.0
        %538 = vmatprep.subr.mxu0 0.0
        %539 = vmatpush1.msra.mxu0 0.0
        %540 = vmatprep.subr.mxu0 0.0
        %541 = vmatpush1.msra.mxu0 0.0
        %542 = vmatprep.subr.mxu0 0.0
        %543 = vmatpush1.msra.mxu0 0.0
        %544 = vmatprep.subr.mxu0 0.0
        %545 = vmatpush1.msra.mxu0 0.0
        %546 = vmatprep.subr.mxu0 0.0
        %547 = vmatpush1.msra.mxu0 0.0
        %548 = vmatprep.subr.mxu0 0.0
        %549 = vmatpush1.msra.mxu0 0.0
        %550 = vmatprep.subr.mxu0 0.0
        %551 = vmatpush1.msra.mxu0 0.0
        %552 = vmatprep.subr.mxu0 0.0
        %553 = vmatpush1.msra.mxu0 0.0
        %554 = vmatprep.subr.mxu0 %v511
        %555 = vmatpush1.msra.mxu0 %v510
        %556 = vmatprep.subr.mxu0 0.0
        %557 = vmatpush2.msra.mxu0 0.0
        %558 = vmatprep.subr.mxu0 0.0
        %559 = vmatpush2.msra.mxu0 0.0
        %560 = vmatprep.subr.mxu0 0.0
        %561 = vmatpush2.msra.mxu0 0.0
        %562 = vmatprep.subr.mxu0 0.0
        %563 = vmatpush2.msra.mxu0 0.0
        %564 = vmatprep.subr.mxu0 0.0
        %565 = vmatpush2.msra.mxu0 0.0
        %566 = vmatprep.subr.mxu0 0.0
        %567 = vmatpush2.msra.mxu0 0.0
        %568 = vmatprep.subr.mxu0 0.0
        %569 = vmatpush2.msra.mxu0 0.0
        %570 = vmatprep.subr.mxu0 0.0
        %571 = vmatpush2.msra.mxu0 0.0
        %572 = vmatprep.subr.mxu0 0.0
        %573 = vmatpush2.msra.mxu0 0.0
        %574 = vmatprep.subr.mxu0 0.0
        %575 = vmatpush2.msra.mxu0 0.0
        %576 = vmatprep.subr.mxu0 0.0
        %577 = vmatpush2.msra.mxu0 0.0
        %578 = vmatprep.subr.mxu0 0.0
        %579 = vmatpush2.msra.mxu0 0.0
        %580 = vmatprep.subr.mxu0 0.0
        %581 = vmatpush2.msra.mxu0 0.0
        %582 = vmatprep.subr.mxu0 0.0
        %583 = vmatpush2.msra.mxu0 0.0
        %584 = vmatprep.subr.mxu0 0.0
        %585 = vmatpush2.msra.mxu0 0.0
        %586 = vmatprep.subr.mxu0 0.0
        %587 = vmatpush2.msra.mxu0 0.0
        %588 = vmatprep.mubr.f32.mxu0 0.0
        %589 = vmatmul.mubr.f32.gmra.mxu0 %v516
        %v590 = vpop.f32.mrf.mxu0
        %v591 = vadd.f32 0.0, %v590
        %v592 = vpop.f32.mrf.mxu0
        %v593 = vadd.f32 0.0, %v592
        %594 = vmatprep.mubr.f32.mxu0 0.0
        %595 = vmatmul.mubr.f32.gmra.mxu0 %v519
        %v596 = vpop.f32.mrf.mxu0
        %v597 = vadd.f32 0.0, %v596
        %v598 = vpop.f32.mrf.mxu0
        %v599 = vadd.f32 0.0, %v598
        %600 = vmatprep.mubr.f32.mxu0 0.0
        %601 = vmatmul.mubr.f32.gmra.mxu0 %v522
        %v602 = vpop.f32.mrf.mxu0
        %v603 = vadd.f32 0.0, %v602
        %v604 = vpop.f32.mrf.mxu0
        %v605 = vadd.f32 0.0, %v604
        %606 = vdwg.mxu0
        %607 = vrot.lane.b32.xlu0 %v591, 1
        %v608 = vpop.permute.xlu0 %607
        %609 = vrot.lane.b32.xlu0 %v593, 1
        %v610 = vpop.permute.xlu0 %609
        %vm611 = vcmp.lt.s32.totalorder %v484, 1
        %v612 = vsel %vm611, %v608, %v610
        %v613 = vsel %vm611, %v610, %v608
        %v614 = vmul.f32 %v289, %v613
        %v615 = vmul.f32 %v290, %v612
        %v616 = vadd.f32 %v614, %v597
        %v617 = vadd.f32 %v615, %v599
        %618 = vrot.lane.b32.xlu0 %v603, 127
        %v619 = vpop.permute.xlu0 %618
        %620 = vrot.lane.b32.xlu0 %v605, 127
        %v621 = vpop.permute.xlu0 %620
        %vm622 = vcmp.lt.s32.totalorder %v484, 127
        %v623 = vsel %vm622, %v619, %v621
        %v624 = vsel %vm622, %v621, %v619
        %v625 = vmul.f32 %v291, %v623
        %v626 = vmul.f32 %v292, %v624
        %v627 = vadd.f32 %v616, %v625
        %v628 = vadd.f32 %v617, %v626
        %630 = vset.pattern.permute.xlu0 0
        %631 = vperm.xlu0 %630, %v280
        %v632 = vpop.permute.xlu0 %631
        %v634 = vadd.f32 %v627, %v632
        %v635 = vadd.f32 %v628, %v632
        %v636 = vmax.f32 %v634, 0.0
        %v637 = vmax.f32 %v635, 0.0
        %v638 = vld [vmem:[%s4] sm:$0xff]
        %v639 = vld [vmem:[%s4 + $0x8] sm:$0xff]
        %v640 = vld [vmem:[%s4 + $0x10] sm:$0xff]
        %v641 = vld [vmem:[%s4 + $0x18] sm:$0xff]
        %643 = vset.pattern.permute.xlu0 0
        %644 = vperm.xlu0 %643, %v281
        %v645 = vpop.permute.xlu0 %644
        %648 = vset.pattern.permute.xlu0 0
        %649 = vperm.xlu0 %648, %v282
        %v650 = vpop.permute.xlu0 %649
        %653 = vset.pattern.permute.xlu0 0
        %654 = vperm.xlu0 %653, %v283
        %v655 = vpop.permute.xlu0 %654
        %658 = vset.pattern.permute.xlu0 0
        %659 = vperm.xlu0 %658, %v284
        %v660 = vpop.permute.xlu0 %659
        %v663 = vsel %vm386, %v638, 0
        %v666 = vsel %vm386, %v639, 0
        %v669 = vsel %vm386, %v640, 0
        %v672 = vsel %vm386, %v641, 0
        %674 = vmatprep.subr.mxu0 0.0
        %675 = vmatpush1.msra.mxu0 0.0
        %676 = vmatprep.subr.mxu0 0.0
        %677 = vmatpush1.msra.mxu0 0.0
        %678 = vmatprep.subr.mxu0 0.0
        %679 = vmatpush1.msra.mxu0 0.0
        %680 = vmatprep.subr.mxu0 0.0
        %681 = vmatpush1.msra.mxu0 0.0
        %682 = vmatprep.subr.mxu0 0.0
        %683 = vmatpush1.msra.mxu0 0.0
        %684 = vmatprep.subr.mxu0 0.0
        %685 = vmatpush1.msra.mxu0 0.0
        %686 = vmatprep.subr.mxu0 0.0
        %687 = vmatpush1.msra.mxu0 0.0
        %688 = vmatprep.subr.mxu0 0.0
        %689 = vmatpush1.msra.mxu0 0.0
        %690 = vmatprep.subr.mxu0 0.0
        %691 = vmatpush1.msra.mxu0 0.0
        %692 = vmatprep.subr.mxu0 0.0
        %693 = vmatpush1.msra.mxu0 0.0
        %694 = vmatprep.subr.mxu0 0.0
        %695 = vmatpush1.msra.mxu0 0.0
        %696 = vmatprep.subr.mxu0 0.0
        %697 = vmatpush1.msra.mxu0 0.0
        %698 = vmatprep.subr.mxu0 0.0
        %699 = vmatpush1.msra.mxu0 0.0
        %700 = vmatprep.subr.mxu0 0.0
        %701 = vmatpush1.msra.mxu0 0.0
        %702 = vmatprep.subr.mxu0 0.0
        %703 = vmatpush1.msra.mxu0 0.0
        %704 = vmatprep.subr.mxu0 %v637
        %705 = vmatpush1.msra.mxu0 %v636
        %706 = vmatprep.subr.mxu0 0.0
        %707 = vmatpush2.msra.mxu0 0.0
        %708 = vmatprep.subr.mxu0 0.0
        %709 = vmatpush2.msra.mxu0 0.0
        %710 = vmatprep.subr.mxu0 0.0
        %711 = vmatpush2.msra.mxu0 0.0
        %712 = vmatprep.subr.mxu0 0.0
        %713 = vmatpush2.msra.mxu0 0.0
        %714 = vmatprep.subr.mxu0 0.0
        %715 = vmatpush2.msra.mxu0 0.0
        %716 = vmatprep.subr.mxu0 0.0
        %717 = vmatpush2.msra.mxu0 0.0
        %718 = vmatprep.subr.mxu0 0.0
        %719 = vmatpush2.msra.mxu0 0.0
        %720 = vmatprep.subr.mxu0 0.0
        %721 = vmatpush2.msra.mxu0 0.0
        %722 = vmatprep.subr.mxu0 0.0
        %723 = vmatpush2.msra.mxu0 0.0
        %724 = vmatprep.subr.mxu0 0.0
        %725 = vmatpush2.msra.mxu0 0.0
        %726 = vmatprep.subr.mxu0 0.0
        %727 = vmatpush2.msra.mxu0 0.0
        %728 = vmatprep.subr.mxu0 0.0
        %729 = vmatpush2.msra.mxu0 0.0
        %730 = vmatprep.subr.mxu0 0.0
        %731 = vmatpush2.msra.mxu0 0.0
        %732 = vmatprep.subr.mxu0 0.0
        %733 = vmatpush2.msra.mxu0 0.0
        %734 = vmatprep.subr.mxu0 0.0
        %735 = vmatpush2.msra.mxu0 0.0
        %736 = vmatprep.subr.mxu0 0.0
        %737 = vmatpush2.msra.mxu0 0.0
        %738 = vmatprep.mubr.f32.mxu0 0.0
        %739 = vmatmul.mubr.f32.gmra.mxu0 %v663
        %v740 = vpop.f32.mrf.mxu0
        %v741 = vadd.f32 %v645, %v740
        %v742 = vpop.f32.mrf.mxu0
        %v743 = vadd.f32 %v645, %v742
        %744 = vmatprep.mubr.f32.mxu0 0.0
        %745 = vmatmul.mubr.f32.gmra.mxu0 %v666
        %v746 = vpop.f32.mrf.mxu0
        %v747 = vadd.f32 %v650, %v746
        %v748 = vpop.f32.mrf.mxu0
        %v749 = vadd.f32 %v650, %v748
        %750 = vmatprep.mubr.f32.mxu0 0.0
        %751 = vmatmul.mubr.f32.gmra.mxu0 %v669
        %v752 = vpop.f32.mrf.mxu0
        %v753 = vadd.f32 %v655, %v752
        %v754 = vpop.f32.mrf.mxu0
        %v755 = vadd.f32 %v655, %v754
        %756 = vmatprep.mubr.f32.mxu0 0.0
        %757 = vmatmul.mubr.f32.gmra.mxu0 %v672
        %v758 = vpop.f32.mrf.mxu0
        %v759 = vadd.f32 %v660, %v758
        %v760 = vpop.f32.mrf.mxu0
        %v761 = vadd.f32 %v660, %v760
        %762 = vdwg.mxu0
        %763 = vst [vmem:[%s271] sm:$0xff] %v741
        %764 = vst [vmem:[%s271 + $0x8] sm:$0xff] %v743
        %765 = vst [vmem:[%s271 + $0x10] sm:$0xff] %v747
        %766 = vst [vmem:[%s271 + $0x18] sm:$0xff] %v749
        %767 = vst [vmem:[%s271 + $0x20] sm:$0xff] %v753
        %768 = vst [vmem:[%s271 + $0x28] sm:$0xff] %v755
        %769 = vst [vmem:[%s271 + $0x30] sm:$0xff] %v759
        %770 = vst [vmem:[%s271 + $0x38] sm:$0xff] %v761
        %s771 = sand.u32 %s181, 1
        %s772 = scalar_lea.sflag [#allocation3], %s771
        %s773 = sand.u32 %s181, 1
        %s774 = smul.addr %s773, 64
        %s775 = scalar_lea.vmem [#allocation2], %s774
        // Predicated region
        $region49: #{tpu_custom_call.1} parent=47 // pred_check
          %p776 = pneg %p191
        $region50: #{tpu_custom_call.1} parent=47 // pred_check_branch
          %778 = sbr.rel (%p776) target = $region52
        $region51: #{tpu_custom_call.1} parent=47 // pred_region
          %s780 = ssub.s32 1024, 1024
          %781 = vsyncadd %s772, %s780
          %s782 = smul.addr %s21, 8
          %s783 = smul.addr %s782, 128
          %s784 = scalar_lea.hbm %s7, %s783
          %s785 = sshll.u32 %s775, 4
          %s786 = int_to_ptr.vmem [resolvable:$true] %s785
          %791 = dma.vmem_to_hbm [thread:$0]  %s786, 1024, %s784, %s772, 256, 256, 16
        $region52: #{tpu_custom_call.1} parent=47 // pred_fallthru
          _
      $region48: #{tpu_custom_call.1} parent=5 // pred_fallthru
        _
      %p792 = scmp.le.s32.totalorder 2, %s16
      // Predicated region
      $region53: #{tpu_custom_call.1} parent=5 // pred_check
        %p793 = pneg %p792
      $region54: #{tpu_custom_call.1} parent=5 // pred_check_branch
        %795 = sbr.rel (%p793) target = $region56
      $region55: #{tpu_custom_call.1} parent=5 // pred_region
        %s796 = ssub.s32 %s16, 2
        // Predicated region
        $region57: #{tpu_custom_call.1} parent=55 // pred_check
          %p797 = pneg %p197
        $region58: #{tpu_custom_call.1} parent=55 // pred_check_branch
          %799 = sbr.rel (%p797) target = $region60
        $region59: #{tpu_custom_call.1} parent=55 // pred_region
          %s800 = sand.u32 %s182, 1
          %s801 = scalar_lea.sflag [#allocation3], %s800
          %s802 = sand.u32 %s182, 1
          %s803 = smul.addr %s802, 64
          %s804 = scalar_lea.vmem [#allocation2], %s803
          %805 = dma.done %s801, 1024
        $region60: #{tpu_custom_call.1} parent=55 // pred_fallthru
          _
      $region56: #{tpu_custom_call.1} parent=5 // pred_fallthru
        _
    $region6: #{tpu_custom_call.1} parent=1 // loop_footer
      %s20 = sadd.s32 1, %s16
    $region7: #{tpu_custom_call.1} parent=1 // loop_footer_branch
      %15 = sbr.rel target = $region3
    $region8: #{tpu_custom_call.1} parent=1 // loop_exit
      _
    %806 = vsyncpa [#allocation3], 1
    %s807 = scalar_lea.sflag [#allocation3], 1
    %808 = vsyncpa %s807, 1

</llo_original>
